<compile_context>
chip_gen: v5e
topology: v5e:2x2
jax: 0.10.0
libtpu: 0.0.40
codegen_flags: <defaults>
</compile_context>

<pallas_src>
import functools

import jax
import jax.numpy as jnp
from jax.experimental import pallas as pl
from jax.experimental.pallas import tpu as pltpu


def _nn_loss_kernel(e0_ref, e1_ref, lab_ref, w1_ref, b1_ref, w2_ref, b2_ref,
                    out_ref, *, d):
    i = pl.program_id(1)  # inner (reduction) axis within this batch chunk

    @pl.when(i == 0)
    def _init():
        out_ref[...] = jnp.zeros_like(out_ref)

    # Embedding tiles arrive as f32 (no HBM cast round trip); cast in VMEM for
    # the bf16 MXU path.
    e0 = e0_ref[...].astype(jnp.bfloat16)
    e1 = e1_ref[...].astype(jnp.bfloat16)

    # Hidden layer: concat(e0, e1) @ W1 + b1 as a split bf16 matmul with f32
    # accumulation (exactly reproduces the dim=1 concat).
    h = (jnp.dot(e0, w1_ref[:d, :], preferred_element_type=jnp.float32)
         + jnp.dot(e1, w1_ref[d:, :], preferred_element_type=jnp.float32)
         + b1_ref[...])
    h = jnp.maximum(h, 0.0)                                     # ReLU

    # Output layer (H -> 1): lane-wise reduce on VPU/XLU instead of an N=1
    # MXU matmul (avoids 1/256 MXU utilization).
    y = jnp.sum(h * w2_ref[...], axis=-1, keepdims=True) + b2_ref[0, 0]

    diff = y - lab_ref[...]                                     # (block_b, 1)
    # Deferred reduction: per-row squared errors accumulate in the resident
    # per-chunk output block; the scalar collapse happens in the wrapper.
    out_ref[...] += diff * diff


def _vmem_budget_bytes():
    try:
        phys = pltpu.get_tpu_info().vmem_capacity_bytes
    except Exception:
        phys = 64 << 20  # v7x per-core physical size; conservative everywhere
    # ~75% of physical: <= ~48 MiB on v7x (64 MiB), <= ~96 MiB on v5e/v6e (128 MiB).
    return int(min(phys * 3 // 4, 96 << 20))


def _pick_block_b(batch, cap):
    """Largest 8-aligned divisor of `batch` that fits under `cap` rows."""
    top = (min(batch, cap) // 8) * 8
    for cand in range(top, 0, -8):
        if batch % cand == 0:
            return cand
    # No 8-aligned divisor under the cap: the only layout-legal block is the
    # full batch. TODO(synk): pad + mask the batch instead for huge odd B.
    return batch


def neural_network_loss(emb0, emb1, labels, w1, b1, w2, b2, *, block_b=None):
    """emb0, emb1: (B, D) f32; labels: (B,) or (B, 1); w1: (2D, H); b1: (H,);
    w2: (H, 1); b2: (1,). Returns scalar f32 MSE loss."""
    B, D = emb0.shape
    H = w1.shape[1]
    assert w1.shape[0] == 2 * D, "w1 must have shape (2*D, H)"
    assert D % 8 == 0, "embedding dim must be a multiple of 8 (sublane aligned)"

    vmem_budget = _vmem_budget_bytes()

    if block_b is None:
        # VMEM-derived row cap: resident weights (default double-buffered) +
        # double-buffered f32 embedding/label streams + per-chunk output rows.
        resident = 2 * (2 * D * H * 2) + 2 * 2 * (H * 4)        # W1 bf16, b1/w2 f32
        stream_row = 2 * (4 * D + 4 * D + 4) + 4                # e0 + e1 + label + out
        avail = vmem_budget - resident - (2 << 20)              # 2 MiB slack
        cap = max(8, min(2048, avail // stream_row))
        block_b = _pick_block_b(B, cap)
    assert B % block_b == 0, "batch must be divisible by the batch tile"

    n_tiles = B // block_b
    # Leading 'parallel' super-chunk axis: lets Mosaic shard the batch across
    # both TensorCores on v7x; degenerates to a serial loop on v5e/v6e.
    n_chunks = 2 if n_tiles % 2 == 0 else 1
    tiles_per_chunk = n_tiles // n_chunks

    # f32 embeddings/labels straight through; only the small resident weights
    # are pre-cast (W1 to bf16 for the MXU).
    emb0 = emb0.astype(jnp.float32)
    emb1 = emb1.astype(jnp.float32)
    labels = labels.reshape(B, 1).astype(jnp.float32)
    w1 = w1.astype(jnp.bfloat16)
    b1_row = b1.reshape(1, H).astype(jnp.float32)
    w2_row = w2.reshape(1, H).astype(jnp.float32)               # (H, 1) -> (1, H)
    b2_s = b2.reshape(1, 1).astype(jnp.float32)

    kernel = functools.partial(_nn_loss_kernel, d=D)

    emb_spec = pl.BlockSpec((block_b, D), lambda c, i: (c * tiles_per_chunk + i, 0))
    lab_spec = pl.BlockSpec((block_b, 1), lambda c, i: (c * tiles_per_chunk + i, 0))
    w1_spec = pl.BlockSpec((2 * D, H), lambda c, i: (0, 0))     # resident
    vec_spec = pl.BlockSpec((1, H), lambda c, i: (0, 0))        # resident rows

    out = pl.pallas_call(
        kernel,
        grid=(n_chunks, tiles_per_chunk),
        in_specs=[
            emb_spec,                                            # emb0 tile (f32)
            emb_spec,                                            # emb1 tile (f32)
            lab_spec,                                            # labels tile
            w1_spec,                                             # W1 (bf16, resident)
            vec_spec,                                            # b1 (resident)
            vec_spec,                                            # w2 row (resident)
            pl.BlockSpec(memory_space=pltpu.MemorySpace.SMEM),   # b2 scalar
        ],
        # Per-chunk resident accumulator of per-row squared errors.
        out_specs=pl.BlockSpec((block_b, 1), lambda c, i: (c, 0)),
        out_shape=jax.ShapeDtypeStruct((n_chunks * block_b, 1), jnp.float32),
        compiler_params=pltpu.CompilerParams(
            dimension_semantics=("parallel", "arbitrary"),
            vmem_limit_bytes=vmem_budget),
    )(emb0, emb1, labels, w1, b1_row, w2_row, b2_s)

    # Final tiny reduction + mean over B*1 elements in the wrapper.
    return jnp.sum(out) * (1.0 / B)


if __name__ == "__main__":
    # Small but MXU-aligned shapes: batch=256, embedding dim=128 (K=2D=256),
    # hidden=128.
    B, D, H = 256, 128, 128
    key = jax.random.PRNGKey(0)
    k_e0, k_e1, k_lab, k_w1, k_b1, k_w2, k_b2 = jax.random.split(key, 7)

    emb0 = jax.random.normal(k_e0, (B, D), dtype=jnp.float32)
    emb1 = jax.random.normal(k_e1, (B, D), dtype=jnp.float32)
    labels = jax.random.normal(k_lab, (B, 1), dtype=jnp.float32)

    # "network" parameters: Linear(2D -> H) -> ReLU -> Linear(H -> 1)
    w1 = jax.random.normal(k_w1, (2 * D, H), dtype=jnp.float32) * 0.05
    b1 = jax.random.normal(k_b1, (H,), dtype=jnp.float32) * 0.05
    w2 = jax.random.normal(k_w2, (H, 1), dtype=jnp.float32) * 0.05
    b2 = jax.random.normal(k_b2, (1,), dtype=jnp.float32) * 0.05

    # Pure-JAX reference with matching bf16-operand / f32-accumulate numerics.
    # (Not bit-identical to PyTorch's all-f32 MSELoss; tested at 5e-3.)
    x = jnp.concatenate([emb0, emb1], axis=1).astype(jnp.bfloat16)
    h = jnp.maximum(
        jnp.dot(x, w1.astype(jnp.bfloat16), preferred_element_type=jnp.float32)
        + b1[None, :], 0.0)
    y = h @ w2 + b2[None, :]
    ref = jnp.mean((y - labels) ** 2)

    # 1) Auto tile-size path (here: one big batch tile, single chunk).
    loss_auto = neural_network_loss(emb0, emb1, labels, w1, b1, w2, b2)
    # 2) Forced small tile exercising the 2-chunk parallel axis + multi-step
    #    accumulation (grid = (2, 2)).
    loss_tiled = neural_network_loss(emb0, emb1, labels, w1, b1, w2, b2,
                                     block_b=64)
    jax.block_until_ready((loss_auto, loss_tiled))

    assert bool(jnp.isfinite(loss_auto)), loss_auto
    assert bool(jnp.isfinite(loss_tiled)), loss_tiled
    assert jnp.allclose(loss_auto, ref, rtol=5e-3, atol=5e-3), (loss_auto, ref)
    assert jnp.allclose(loss_tiled, ref, rtol=5e-3, atol=5e-3), (loss_tiled, ref)

    print("KERNEL_OK")
</pallas_src>

<mosaic_0001>
module attributes {stable_mosaic.version = 11 : i64} {
  func.func @_nn_loss_kernel(%arg0: i32, %arg1: i32, %arg2: memref<256x128xf32, #tpu.memory_space<vmem>>, %arg3: memref<256x128xf32, #tpu.memory_space<vmem>>, %arg4: memref<256x1xf32, #tpu.memory_space<vmem>>, %arg5: memref<256x128xbf16, #tpu.memory_space<vmem>>, %arg6: memref<1x128xf32, #tpu.memory_space<vmem>>, %arg7: memref<1x128xf32, #tpu.memory_space<vmem>>, %arg8: memref<1x1xf32, #tpu.memory_space<smem>>, %arg9: memref<256x1xf32, #tpu.memory_space<vmem>>) attributes {dimension_semantics = [#tpu.dimension_semantics<parallel>, #tpu.dimension_semantics<arbitrary>], iteration_bounds = array<i64: 1, 1>, scalar_prefetch = 0 : i64, scratch_operands = 0 : i64, tpu.core_type = #tpu.core_type<tc>, window_params = [{transform_indices = @transform_0, window_bounds = array<i64: 256, 128>}, {transform_indices = @transform_1, window_bounds = array<i64: 256, 128>}, {transform_indices = @transform_2, window_bounds = array<i64: 256, 1>}, {pipeline_mode = #tpu.pipeline_mode<synchronous>, transform_indices = @transform_3, window_bounds = array<i64: 256, 128>}, {pipeline_mode = #tpu.pipeline_mode<synchronous>, transform_indices = @transform_4, window_bounds = array<i64: 1, 128>}, {pipeline_mode = #tpu.pipeline_mode<synchronous>, transform_indices = @transform_5, window_bounds = array<i64: 1, 128>}, {transform_indices = @transform_6, window_bounds = array<i64: 1, 1>}, {transform_indices = @transform_7, window_bounds = array<i64: 256, 1>}]} {
    %c0_i32 = arith.constant 0 : i32
    %0 = arith.cmpi eq, %arg1, %c0_i32 : i32
    %1 = arith.extui %0 : i1 to i32
    %c0_i32_0 = arith.constant 0 : i32
    %2 = arith.cmpi ne, %1, %c0_i32_0 : i32
    scf.if %2 {
      %cst_22 = arith.constant 0.000000e+00 : f32
      %31 = vector.broadcast %cst_22 : f32 to vector<256x1xf32>
      %c0_23 = arith.constant 0 : index
      %c0_24 = arith.constant 0 : index
      %32 = vector.load %arg9[%c0_23, %c0_24] : memref<256x1xf32, #tpu.memory_space<vmem>>, vector<256x1xf32>
      tpu.vector_store %arg9[%c0_23, %c0_24], %31 {strides = array<i32>} : memref<256x1xf32, #tpu.memory_space<vmem>>, vector<256x1xf32>,
    } else {
    }
    %c0 = arith.constant 0 : index
    %c0_1 = arith.constant 0 : index
    %3 = vector.load %arg2[%c0, %c0_1] : memref<256x128xf32, #tpu.memory_space<vmem>>, vector<256x128xf32>
    %4 = arith.truncf %3 : vector<256x128xf32> to vector<256x128xbf16>
    %c0_2 = arith.constant 0 : index
    %c0_3 = arith.constant 0 : index
    %5 = vector.load %arg3[%c0_2, %c0_3] : memref<256x128xf32, #tpu.memory_space<vmem>>, vector<256x128xf32>
    %6 = arith.truncf %5 : vector<256x128xf32> to vector<256x128xbf16>
    %c0_4 = arith.constant 0 : index
    %c0_5 = arith.constant 0 : index
    %7 = vector.load %arg5[%c0_4, %c0_5] : memref<256x128xbf16, #tpu.memory_space<vmem>>, vector<128x128xbf16>
    %cst = arith.constant dense<0.000000e+00> : vector<256x128xf32>
    %8 = tpu.matmul %4, %7, %cst {dimension_numbers = #tpu.dot_dimension_numbers<[1], [0], [0], [1], [0, 0, 1, 1], [], []>} : vector<256x128xbf16>, vector<128x128xbf16>, vector<256x128xf32> -> vector<256x128xf32>
    %c128 = arith.constant 128 : index
    %c0_6 = arith.constant 0 : index
    %9 = vector.load %arg5[%c128, %c0_6] : memref<256x128xbf16, #tpu.memory_space<vmem>>, vector<128x128xbf16>
    %cst_7 = arith.constant dense<0.000000e+00> : vector<256x128xf32>
    %10 = tpu.matmul %6, %9, %cst_7 {dimension_numbers = #tpu.dot_dimension_numbers<[1], [0], [0], [1], [0, 0, 1, 1], [], []>} : vector<256x128xbf16>, vector<128x128xbf16>, vector<256x128xf32> -> vector<256x128xf32>
    %11 = arith.addf %8, %10 : vector<256x128xf32>
    %c0_8 = arith.constant 0 : index
    %c0_9 = arith.constant 0 : index
    %12 = vector.load %arg6[%c0_8, %c0_9] : memref<1x128xf32, #tpu.memory_space<vmem>>, vector<1x128xf32>
    %13 = vector.broadcast %12 : vector<1x128xf32> to vector<256x128xf32>
    %14 = arith.addf %11, %13 : vector<256x128xf32>
    %cst_10 = arith.constant 0.000000e+00 : f32
    %15 = vector.broadcast %cst_10 : f32 to vector<256x128xf32>
    %16 = arith.maximumf %14, %15 : vector<256x128xf32>
    %c0_11 = arith.constant 0 : index
    %c0_12 = arith.constant 0 : index
    %17 = vector.load %arg7[%c0_11, %c0_12] : memref<1x128xf32, #tpu.memory_space<vmem>>, vector<1x128xf32>
    %18 = vector.broadcast %17 : vector<1x128xf32> to vector<256x128xf32>
    %19 = arith.mulf %16, %18 : vector<256x128xf32>
    %cst_13 = arith.constant dense<0.000000e+00> : vector<256xf32>
    %20 = vector.multi_reduction <add>, %19, %cst_13 [1] : vector<256x128xf32> to vector<256xf32>
    %21 = vector.shape_cast %20 : vector<256xf32> to vector<256x1xf32>
    %c0_14 = arith.constant 0 : index
    %c0_15 = arith.constant 0 : index
    %22 = memref.load %arg8[%c0_14, %c0_15] : memref<1x1xf32, #tpu.memory_space<smem>>
    %23 = vector.broadcast %22 : f32 to vector<256x1xf32>
    %24 = arith.addf %21, %23 : vector<256x1xf32>
    %c0_16 = arith.constant 0 : index
    %c0_17 = arith.constant 0 : index
    %25 = vector.load %arg4[%c0_16, %c0_17] : memref<256x1xf32, #tpu.memory_space<vmem>>, vector<256x1xf32>
    %26 = arith.subf %24, %25 : vector<256x1xf32>
    %c0_18 = arith.constant 0 : index
    %c0_19 = arith.constant 0 : index
    %27 = vector.load %arg9[%c0_18, %c0_19] : memref<256x1xf32, #tpu.memory_space<vmem>>, vector<256x1xf32>
    %28 = arith.mulf %26, %26 : vector<256x1xf32>
    %29 = arith.addf %27, %28 : vector<256x1xf32>
    %c0_20 = arith.constant 0 : index
    %c0_21 = arith.constant 0 : index
    %30 = vector.load %arg9[%c0_20, %c0_21] : memref<256x1xf32, #tpu.memory_space<vmem>>, vector<256x1xf32>
    tpu.vector_store %arg9[%c0_20, %c0_21], %29 {strides = array<i32>} : memref<256x1xf32, #tpu.memory_space<vmem>>, vector<256x1xf32>,
    return
  }
  func.func @transform_0(%arg0: i32, %arg1: i32) -> (i32, i32) {
    %c1_i32 = arith.constant 1 : i32
    %0 = arith.muli %arg0, %c1_i32 : i32
    %1 = arith.addi %0, %arg1 : i32
    %c0_i32 = arith.constant 0 : i32
    %c0_i32_0 = arith.constant 0 : i32
    return %1, %c0_i32 : i32, i32
  }
  func.func @transform_1(%arg0: i32, %arg1: i32) -> (i32, i32) {
    %c1_i32 = arith.constant 1 : i32
    %0 = arith.muli %arg0, %c1_i32 : i32
    %1 = arith.addi %0, %arg1 : i32
    %c0_i32 = arith.constant 0 : i32
    %c0_i32_0 = arith.constant 0 : i32
    return %1, %c0_i32 : i32, i32
  }
  func.func @transform_2(%arg0: i32, %arg1: i32) -> (i32, i32) {
    %c1_i32 = arith.constant 1 : i32
    %0 = arith.muli %arg0, %c1_i32 : i32
    %1 = arith.addi %0, %arg1 : i32
    %c0_i32 = arith.constant 0 : i32
    %c0_i32_0 = arith.constant 0 : i32
    return %1, %c0_i32 : i32, i32
  }
  func.func @transform_3(%arg0: i32, %arg1: i32) -> (i32, i32) {
    %c0_i32 = arith.constant 0 : i32
    %c0_i32_0 = arith.constant 0 : i32
    %c0_i32_1 = arith.constant 0 : i32
    return %c0_i32, %c0_i32_0 : i32, i32
  }
  func.func @transform_4(%arg0: i32, %arg1: i32) -> (i32, i32) {
    %c0_i32 = arith.constant 0 : i32
    %c0_i32_0 = arith.constant 0 : i32
    %c0_i32_1 = arith.constant 0 : i32
    return %c0_i32, %c0_i32_0 : i32, i32
  }
  func.func @transform_5(%arg0: i32, %arg1: i32) -> (i32, i32) {
    %c0_i32 = arith.constant 0 : i32
    %c0_i32_0 = arith.constant 0 : i32
    %c0_i32_1 = arith.constant 0 : i32
    return %c0_i32, %c0_i32_0 : i32, i32
  }
  func.func @transform_6(%arg0: i32, %arg1: i32) -> (i32, i32) {
    %c0_i32 = arith.constant 0 : i32
    %c0_i32_0 = arith.constant 0 : i32
    %c0_i32_1 = arith.constant 0 : i32
    return %c0_i32, %c0_i32_0 : i32, i32
  }
  func.func @transform_7(%arg0: i32, %arg1: i32) -> (i32, i32) {
    %c0_i32 = arith.constant 0 : i32
    %c0_i32_0 = arith.constant 0 : i32
    return %arg0, %c0_i32 : i32, i32
  }
}

</mosaic_0001>

<llo_original>
// kernel: tpu_custom_call.1
$region0: #{tpu_custom_call.1}
  #allocation0 [shape = 'u32[]', space=smem, size = 0x4, offset = 0x4, fixed_abs, tag = 'smem constant byte address 0x4 - core index']
  #allocation1 [shape = 'u32[72,128]{1,0:T(1,128)}', space=vmem, size = 0x9000, scoped, tag = 'internal scratch']
  #allocation2 [shape = 'f32[1,1]{1,0:T(1,128)S(6)}', space=smem, size = 0x200, scoped, tag = 'scoped memory for tpu_custom_call.1']
  %s0 = inlined_call_operand.vmem [shape: f32[256,128], index: 0, kind: input, shape index: {}]
  %s1 = inlined_call_operand.hbm [shape: f32[256,128], index: 1, kind: input, shape index: {}]
  %s2 = inlined_call_operand.vmem [shape: f32[256,1], index: 2, kind: input, shape index: {}]
  %s3 = inlined_call_operand.hbm [shape: bf16[256,128], index: 3, kind: input, shape index: {}]
  %s4 = inlined_call_operand.vmem [shape: f32[1,128], index: 4, kind: input, shape index: {}]
  %s5 = inlined_call_operand.vmem [shape: f32[1,128], index: 5, kind: input, shape index: {}]
  %s6 = inlined_call_operand.<no memory space> [shape: f32[1,1], index: 6, kind: input, shape index: {}]
  %s7 = inlined_call_operand.vmem [shape: f32[256,1], index: 7, kind: output, shape index: {}]
  %s8 = sld [smem:[#allocation0]]
  $region50: #{tpu_custom_call.1} parent=0
    _
  %s10 = ssub.s32 1, %s8
  %s11 = scalar_select 0, %s10, %s8
  %12 = sst [smem:[#allocation2]] %s6
  $region1: #{tpu_custom_call.1} parent=0
    #allocation3 [shape = 'u8[131072]{0}', space=vmem, size = 0x20000, scoped, tag = 'input window, operand 1, single buffered']
    #allocation4 [shape = 's32[1]{0}', space=sflag, size = 0x4, scoped, tag = 'scoped memory for tpu_custom_call.1']
    #allocation5 [shape = 'u8[65536]{0}', space=vmem, size = 0x10000, scoped, tag = 'input window, operand 3, single buffered']
    #allocation6 [shape = 's32[1]{0}', space=sflag, size = 0x4, scoped, tag = 'scoped memory for tpu_custom_call.1']
    %13 = vsyncpa [#allocation4], 0
    %14 = vsyncpa [#allocation6], 0
    // Predicated region
    $region2: #{tpu_custom_call.1} parent=1 // pred_check
      _
    $region3: #{tpu_custom_call.1} parent=1 // pred_check_branch
      %16 = sbr.rel (0) target = $region5
    $region4: #{tpu_custom_call.1} parent=1 // pred_region
      %s17 = sadd.s32 0, 0
      %s18 = smul.u32 32, %s17
      %p19 = scmp.lt.s32.totalorder %s18, 31
      %s20 = scalar_select %p19, %s18, 31
      %s21 = smul.addr %s20, 8
      %s22 = scalar_lea.vmem %s0, %s21
      %s23 = sadd.s32 0, 0
      %s24 = smul.u32 32, %s23
    $region5: #{tpu_custom_call.1} parent=1 // pred_fallthru
      _
    // Predicated region
    $region6: #{tpu_custom_call.1} parent=1 // pred_check
      _
    $region7: #{tpu_custom_call.1} parent=1 // pred_check_branch
      %26 = sbr.rel (0) target = $region9
    $region8: #{tpu_custom_call.1} parent=1 // pred_region
      %s27 = sadd.s32 0, 0
      %s28 = smul.u32 32, %s27
      %30 = vsyncadd [#allocation4], 0
      %s31 = smul.addr %s28, 8
      %s32 = scalar_lea.hbm %s1, %s31
      %s33 = sshll.u32 %s32, 4
      %s34 = int_to_ptr.hbm [resolvable:$true] %s33
      %s35 = sshll.u32 [#allocation3], 4
      %s36 = int_to_ptr.vmem [resolvable:$true] %s35
      %41 = dma.hbm_to_vmem [thread:$0]  %s34, 4096, %s36, [#allocation4], 128, 128, 8
    $region9: #{tpu_custom_call.1} parent=1 // pred_fallthru
      _
    // Predicated region
    $region10: #{tpu_custom_call.1} parent=1 // pred_check
      _
    $region11: #{tpu_custom_call.1} parent=1 // pred_check_branch
      %43 = sbr.rel (0) target = $region13
    $region12: #{tpu_custom_call.1} parent=1 // pred_region
      %s44 = sadd.s32 0, 0
      %s45 = smul.u32 32, %s44
      %p46 = scmp.lt.s32.totalorder %s45, 31
      %s47 = scalar_select %p46, %s45, 31
      %s48 = smul.addr %s47, 8
      %s49 = scalar_lea.vmem %s2, %s48
      %s50 = sadd.s32 0, 0
      %s51 = smul.u32 32, %s50
    $region13: #{tpu_custom_call.1} parent=1 // pred_fallthru
      _
    // Predicated region
    $region14: #{tpu_custom_call.1} parent=1 // pred_check
      _
    $region15: #{tpu_custom_call.1} parent=1 // pred_check_branch
      %53 = sbr.rel (0) target = $region17
    $region16: #{tpu_custom_call.1} parent=1 // pred_region
      %55 = vsyncadd [#allocation6], 0
      %s56 = sshll.u32 %s3, 4
      %s57 = int_to_ptr.hbm [resolvable:$true] %s56
      %s58 = sshll.u32 [#allocation5], 4
      %s59 = int_to_ptr.vmem [resolvable:$true] %s58
      %64 = dma.hbm_to_vmem [thread:$0]  %s57, 2048, %s59, [#allocation6], 64, 64, 4
    $region17: #{tpu_custom_call.1} parent=1 // pred_fallthru
      _
    // Predicated region
    $region18: #{tpu_custom_call.1} parent=1 // pred_check
      _
    $region19: #{tpu_custom_call.1} parent=1 // pred_check_branch
      %66 = sbr.rel (0) target = $region21
    $region20: #{tpu_custom_call.1} parent=1 // pred_region
      _
    $region21: #{tpu_custom_call.1} parent=1 // pred_fallthru
      _
    // Predicated region
    $region22: #{tpu_custom_call.1} parent=1 // pred_check
      _
    $region23: #{tpu_custom_call.1} parent=1 // pred_check_branch
      %68 = sbr.rel (0) target = $region25
    $region24: #{tpu_custom_call.1} parent=1 // pred_region
      _
    $region25: #{tpu_custom_call.1} parent=1 // pred_fallthru
      _
    // Predicated region
    $region26: #{tpu_custom_call.1} parent=1 // pred_check
      _
    $region27: #{tpu_custom_call.1} parent=1 // pred_check_branch
      %70 = sbr.rel (0) target = $region29
    $region28: #{tpu_custom_call.1} parent=1 // pred_region
      _
    $region29: #{tpu_custom_call.1} parent=1 // pred_fallthru
      _
    // Predicated region
    $region30: #{tpu_custom_call.1} parent=1 // pred_check
      _
    $region31: #{tpu_custom_call.1} parent=1 // pred_check_branch
      %72 = sbr.rel (0) target = $region33
    $region32: #{tpu_custom_call.1} parent=1 // pred_region
      %74 = dma.done [#allocation4], 4096
    $region33: #{tpu_custom_call.1} parent=1 // pred_fallthru
      _
    // Predicated region
    $region34: #{tpu_custom_call.1} parent=1 // pred_check
      _
    $region35: #{tpu_custom_call.1} parent=1 // pred_check_branch
      %76 = sbr.rel (0) target = $region37
    $region36: #{tpu_custom_call.1} parent=1 // pred_region
      %78 = dma.done [#allocation6], 2048
    $region37: #{tpu_custom_call.1} parent=1 // pred_fallthru
      _
    %s79 = sadd.s32 0, 0
    %s80 = smul.u32 32, %s79
    %p81 = scmp.lt.s32.totalorder %s80, 31
    %s82 = scalar_select %p81, %s80, 31
    %s83 = smul.addr %s82, 8
    %s84 = scalar_lea.vmem %s0, %s83
    %s85 = sadd.s32 0, 0
    %s86 = smul.u32 32, %s85
    %p87 = scmp.lt.s32.totalorder %s86, 31
    %s88 = scalar_select %p87, %s86, 31
    %s89 = smul.addr %s88, 8
    %s90 = scalar_lea.vmem %s2, %s89
    %s91 = sadd.s32 0, 0
    %s92 = smul.u32 32, %s91
    %p93 = scmp.lt.s32.totalorder %s92, 31
    %s94 = scalar_select %p93, %s92, 31
    %s95 = smul.addr %s94, 8
    %s96 = scalar_lea.vmem %s0, %s95
    %s97 = sadd.s32 0, 0
    %s98 = smul.u32 32, %s97
    %s99 = sadd.s32 0, 0
    %s100 = smul.u32 32, %s99
    %s101 = sadd.s32 0, 0
    %s102 = smul.u32 32, %s101
    %p103 = scmp.lt.s32.totalorder %s102, 31
    %s104 = scalar_select %p103, %s102, 31
    %s105 = smul.addr %s104, 8
    %s106 = scalar_lea.vmem %s2, %s105
    %s107 = sadd.s32 0, 0
    %s108 = smul.u32 32, %s107
    %p109 = scmp.eq.s32.totalorder 0, 0
    // Predicated region
    $region38: #{tpu_custom_call.1} parent=1 // pred_check
      %p110 = pneg %p109
    $region39: #{tpu_custom_call.1} parent=1 // pred_check_branch
      %112 = sbr.rel (%p110) target = $region41
    $region40: #{tpu_custom_call.1} parent=1 // pred_region
      %vm113 = vcmask 7168
      %114 = vst.msk [vmem:[%s7] sm:$0xff] %vm113, 0.0
      %115 = vst.msk [vmem:[%s7 + $0x8] sm:$0xff] %vm113, 0.0
      %116 = vst.msk [vmem:[%s7 + $0x10] sm:$0xff] %vm113, 0.0
      %117 = vst.msk [vmem:[%s7 + $0x18] sm:$0xff] %vm113, 0.0
      %118 = vst.msk [vmem:[%s7 + $0x20] sm:$0xff] %vm113, 0.0
      %119 = vst.msk [vmem:[%s7 + $0x28] sm:$0xff] %vm113, 0.0
      %120 = vst.msk [vmem:[%s7 + $0x30] sm:$0xff] %vm113, 0.0
      %121 = vst.msk [vmem:[%s7 + $0x38] sm:$0xff] %vm113, 0.0
      %122 = vst.msk [vmem:[%s7 + $0x40] sm:$0xff] %vm113, 0.0
      %123 = vst.msk [vmem:[%s7 + $0x48] sm:$0xff] %vm113, 0.0
      %124 = vst.msk [vmem:[%s7 + $0x50] sm:$0xff] %vm113, 0.0
      %125 = vst.msk [vmem:[%s7 + $0x58] sm:$0xff] %vm113, 0.0
      %126 = vst.msk [vmem:[%s7 + $0x60] sm:$0xff] %vm113, 0.0
      %127 = vst.msk [vmem:[%s7 + $0x68] sm:$0xff] %vm113, 0.0
      %128 = vst.msk [vmem:[%s7 + $0x70] sm:$0xff] %vm113, 0.0
      %129 = vst.msk [vmem:[%s7 + $0x78] sm:$0xff] %vm113, 0.0
      %130 = vst.msk [vmem:[%s7 + $0x80] sm:$0xff] %vm113, 0.0
      %131 = vst.msk [vmem:[%s7 + $0x88] sm:$0xff] %vm113, 0.0
      %132 = vst.msk [vmem:[%s7 + $0x90] sm:$0xff] %vm113, 0.0
      %133 = vst.msk [vmem:[%s7 + $0x98] sm:$0xff] %vm113, 0.0
      %134 = vst.msk [vmem:[%s7 + $0xa0] sm:$0xff] %vm113, 0.0
      %135 = vst.msk [vmem:[%s7 + $0xa8] sm:$0xff] %vm113, 0.0
      %136 = vst.msk [vmem:[%s7 + $0xb0] sm:$0xff] %vm113, 0.0
      %137 = vst.msk [vmem:[%s7 + $0xb8] sm:$0xff] %vm113, 0.0
      %138 = vst.msk [vmem:[%s7 + $0xc0] sm:$0xff] %vm113, 0.0
      %139 = vst.msk [vmem:[%s7 + $0xc8] sm:$0xff] %vm113, 0.0
      %140 = vst.msk [vmem:[%s7 + $0xd0] sm:$0xff] %vm113, 0.0
      %141 = vst.msk [vmem:[%s7 + $0xd8] sm:$0xff] %vm113, 0.0
      %142 = vst.msk [vmem:[%s7 + $0xe0] sm:$0xff] %vm113, 0.0
      %143 = vst.msk [vmem:[%s7 + $0xe8] sm:$0xff] %vm113, 0.0
      %144 = vst.msk [vmem:[%s7 + $0xf0] sm:$0xff] %vm113, 0.0
      %145 = vst.msk [vmem:[%s7 + $0xf8] sm:$0xff] %vm113, 0.0
    $region41: #{tpu_custom_call.1} parent=1 // pred_fallthru
      _
    %v146 = vld [vmem:[%s96] sm:$0xff]
    %v147 = vld [vmem:[%s96 + $0x8] sm:$0xff]
    %v148 = vld [vmem:[%s96 + $0x10] sm:$0xff]
    %v149 = vld [vmem:[%s96 + $0x18] sm:$0xff]
    %v150 = vld [vmem:[%s96 + $0x20] sm:$0xff]
    %v151 = vld [vmem:[%s96 + $0x28] sm:$0xff]
    %v152 = vld [vmem:[%s96 + $0x30] sm:$0xff]
    %v153 = vld [vmem:[%s96 + $0x38] sm:$0xff]
    %v154 = vld [vmem:[%s96 + $0x40] sm:$0xff]
    %v155 = vld [vmem:[%s96 + $0x48] sm:$0xff]
    %v156 = vld [vmem:[%s96 + $0x50] sm:$0xff]
    %v157 = vld [vmem:[%s96 + $0x58] sm:$0xff]
    %v158 = vld [vmem:[%s96 + $0x60] sm:$0xff]
    %v159 = vld [vmem:[%s96 + $0x68] sm:$0xff]
    %v160 = vld [vmem:[%s96 + $0x70] sm:$0xff]
    %v161 = vld [vmem:[%s96 + $0x78] sm:$0xff]
    %v162 = vld [vmem:[%s96 + $0x80] sm:$0xff]
    %v163 = vld [vmem:[%s96 + $0x88] sm:$0xff]
    %v164 = vld [vmem:[%s96 + $0x90] sm:$0xff]
    %v165 = vld [vmem:[%s96 + $0x98] sm:$0xff]
    %v166 = vld [vmem:[%s96 + $0xa0] sm:$0xff]
    %v167 = vld [vmem:[%s96 + $0xa8] sm:$0xff]
    %v168 = vld [vmem:[%s96 + $0xb0] sm:$0xff]
    %v169 = vld [vmem:[%s96 + $0xb8] sm:$0xff]
    %v170 = vld [vmem:[%s96 + $0xc0] sm:$0xff]
    %v171 = vld [vmem:[%s96 + $0xc8] sm:$0xff]
    %v172 = vld [vmem:[%s96 + $0xd0] sm:$0xff]
    %v173 = vld [vmem:[%s96 + $0xd8] sm:$0xff]
    %v174 = vld [vmem:[%s96 + $0xe0] sm:$0xff]
    %v175 = vld [vmem:[%s96 + $0xe8] sm:$0xff]
    %v176 = vld [vmem:[%s96 + $0xf0] sm:$0xff]
    %v177 = vld [vmem:[%s96 + $0xf8] sm:$0xff]
    %v178 = vpack.c.bf16 %v147, %v146
    %v179 = vpack.c.bf16 %v149, %v148
    %v180 = vpack.c.bf16 %v151, %v150
    %v181 = vpack.c.bf16 %v153, %v152
    %v182 = vpack.c.bf16 %v155, %v154
    %v183 = vpack.c.bf16 %v157, %v156
    %v184 = vpack.c.bf16 %v159, %v158
    %v185 = vpack.c.bf16 %v161, %v160
    %v186 = vpack.c.bf16 %v163, %v162
    %v187 = vpack.c.bf16 %v165, %v164
    %v188 = vpack.c.bf16 %v167, %v166
    %v189 = vpack.c.bf16 %v169, %v168
    %v190 = vpack.c.bf16 %v171, %v170
    %v191 = vpack.c.bf16 %v173, %v172
    %v192 = vpack.c.bf16 %v175, %v174
    %v193 = vpack.c.bf16 %v177, %v176
    %v194 = vld [vmem:[#allocation3] sm:$0xff]
    %v195 = vld [vmem:[#allocation3 + $0x8] sm:$0xff]
    %v196 = vld [vmem:[#allocation3 + $0x10] sm:$0xff]
    %v197 = vld [vmem:[#allocation3 + $0x18] sm:$0xff]
    %v198 = vld [vmem:[#allocation3 + $0x20] sm:$0xff]
    %v199 = vld [vmem:[#allocation3 + $0x28] sm:$0xff]
    %v200 = vld [vmem:[#allocation3 + $0x30] sm:$0xff]
    %v201 = vld [vmem:[#allocation3 + $0x38] sm:$0xff]
    %v202 = vld [vmem:[#allocation3 + $0x40] sm:$0xff]
    %v203 = vld [vmem:[#allocation3 + $0x48] sm:$0xff]
    %v204 = vld [vmem:[#allocation3 + $0x50] sm:$0xff]
    %v205 = vld [vmem:[#allocation3 + $0x58] sm:$0xff]
    %v206 = vld [vmem:[#allocation3 + $0x60] sm:$0xff]
    %v207 = vld [vmem:[#allocation3 + $0x68] sm:$0xff]
    %v208 = vld [vmem:[#allocation3 + $0x70] sm:$0xff]
    %v209 = vld [vmem:[#allocation3 + $0x78] sm:$0xff]
    %v210 = vld [vmem:[#allocation3 + $0x80] sm:$0xff]
    %v211 = vld [vmem:[#allocation3 + $0x88] sm:$0xff]
    %v212 = vld [vmem:[#allocation3 + $0x90] sm:$0xff]
    %v213 = vld [vmem:[#allocation3 + $0x98] sm:$0xff]
    %v214 = vld [vmem:[#allocation3 + $0xa0] sm:$0xff]
    %v215 = vld [vmem:[#allocation3 + $0xa8] sm:$0xff]
    %v216 = vld [vmem:[#allocation3 + $0xb0] sm:$0xff]
    %v217 = vld [vmem:[#allocation3 + $0xb8] sm:$0xff]
    %v218 = vld [vmem:[#allocation3 + $0xc0] sm:$0xff]
    %v219 = vld [vmem:[#allocation3 + $0xc8] sm:$0xff]
    %v220 = vld [vmem:[#allocation3 + $0xd0] sm:$0xff]
    %v221 = vld [vmem:[#allocation3 + $0xd8] sm:$0xff]
    %v222 = vld [vmem:[#allocation3 + $0xe0] sm:$0xff]
    %v223 = vld [vmem:[#allocation3 + $0xe8] sm:$0xff]
    %v224 = vld [vmem:[#allocation3 + $0xf0] sm:$0xff]
    %v225 = vld [vmem:[#allocation3 + $0xf8] sm:$0xff]
    %v226 = vpack.c.bf16 %v195, %v194
    %v227 = vpack.c.bf16 %v197, %v196
    %v228 = vpack.c.bf16 %v199, %v198
    %v229 = vpack.c.bf16 %v201, %v200
    %v230 = vpack.c.bf16 %v203, %v202
    %v231 = vpack.c.bf16 %v205, %v204
    %v232 = vpack.c.bf16 %v207, %v206
    %v233 = vpack.c.bf16 %v209, %v208
    %v234 = vpack.c.bf16 %v211, %v210
    %v235 = vpack.c.bf16 %v213, %v212
    %v236 = vpack.c.bf16 %v215, %v214
    %v237 = vpack.c.bf16 %v217, %v216
    %v238 = vpack.c.bf16 %v219, %v218
    %v239 = vpack.c.bf16 %v221, %v220
    %v240 = vpack.c.bf16 %v223, %v222
    %v241 = vpack.c.bf16 %v225, %v224
    %v242 = vld [vmem:[#allocation5] sm:$0xf]
    %v243 = vld [vmem:[#allocation5 + $0x4] sm:$0xf]
    %v244 = vld [vmem:[#allocation5 + $0x8] sm:$0xf]
    %v245 = vld [vmem:[#allocation5 + $0xc] sm:$0xf]
    %v246 = vld [vmem:[#allocation5 + $0x10] sm:$0xf]
    %v247 = vld [vmem:[#allocation5 + $0x14] sm:$0xf]
    %v248 = vld [vmem:[#allocation5 + $0x18] sm:$0xf]
    %v249 = vld [vmem:[#allocation5 + $0x1c] sm:$0xf]
    %v250 = vld [vmem:[#allocation5 + $0x20] sm:$0xf]
    %v251 = vld [vmem:[#allocation5 + $0x24] sm:$0xf]
    %v252 = vld [vmem:[#allocation5 + $0x28] sm:$0xf]
    %v253 = vld [vmem:[#allocation5 + $0x2c] sm:$0xf]
    %v254 = vld [vmem:[#allocation5 + $0x30] sm:$0xf]
    %v255 = vld [vmem:[#allocation5 + $0x34] sm:$0xf]
    %v256 = vld [vmem:[#allocation5 + $0x38] sm:$0xf]
    %v257 = vld [vmem:[#allocation5 + $0x3c] sm:$0xf]
    %v258 = vld [vmem:[#allocation5 + $0x40] sm:$0xf]
    %v259 = vld [vmem:[#allocation5 + $0x44] sm:$0xf]
    %v260 = vld [vmem:[#allocation5 + $0x48] sm:$0xf]
    %v261 = vld [vmem:[#allocation5 + $0x4c] sm:$0xf]
    %v262 = vld [vmem:[#allocation5 + $0x50] sm:$0xf]
    %v263 = vld [vmem:[#allocation5 + $0x54] sm:$0xf]
    %v264 = vld [vmem:[#allocation5 + $0x58] sm:$0xf]
    %v265 = vld [vmem:[#allocation5 + $0x5c] sm:$0xf]
    %v266 = vld [vmem:[#allocation5 + $0x60] sm:$0xf]
    %v267 = vld [vmem:[#allocation5 + $0x64] sm:$0xf]
    %v268 = vld [vmem:[#allocation5 + $0x68] sm:$0xf]
    %v269 = vld [vmem:[#allocation5 + $0x6c] sm:$0xf]
    %v270 = vld [vmem:[#allocation5 + $0x70] sm:$0xf]
    %v271 = vld [vmem:[#allocation5 + $0x74] sm:$0xf]
    %v272 = vld [vmem:[#allocation5 + $0x78] sm:$0xf]
    %v273 = vld [vmem:[#allocation5 + $0x7c] sm:$0xf]
    %v290 = vunpack.c.l.b16 %v258
    %v291 = vunpack.c.l.b16 %v259
    %v292 = vunpack.c.l.b16 %v260
    %v293 = vunpack.c.l.b16 %v261
    %v294 = vunpack.c.l.b16 %v262
    %v295 = vunpack.c.l.b16 %v263
    %v296 = vunpack.c.l.b16 %v264
    %v297 = vunpack.c.l.b16 %v265
    %v298 = vunpack.c.l.b16 %v266
    %v299 = vunpack.c.l.b16 %v267
    %v300 = vunpack.c.l.b16 %v268
    %v301 = vunpack.c.l.b16 %v269
    %v302 = vunpack.c.l.b16 %v270
    %v303 = vunpack.c.l.b16 %v271
    %v304 = vunpack.c.l.b16 %v272
    %v305 = vunpack.c.l.b16 %v273
    %v306 = vpack.c.b16 %v291, %v290
    %v307 = vpack.c.b16 %v293, %v292
    %v308 = vpack.c.b16 %v295, %v294
    %v309 = vpack.c.b16 %v297, %v296
    %v310 = vpack.c.b16 %v299, %v298
    %v311 = vpack.c.b16 %v301, %v300
    %v312 = vpack.c.b16 %v303, %v302
    %v313 = vpack.c.b16 %v305, %v304
    %322 = vmatpush.bf16.msra.mxu0 %v313
    %323 = vmatpush.bf16.msra.mxu0 %v312
    %324 = vmatpush.bf16.msra.mxu0 %v311
    %325 = vmatpush.bf16.msra.mxu0 %v310
    %326 = vmatpush.bf16.msra.mxu0 %v309
    %327 = vmatpush.bf16.msra.mxu0 %v308
    %328 = vmatpush.bf16.msra.mxu0 %v307
    %329 = vmatpush.bf16.msra.mxu0 %v306
    %330 = vmatmul.bf16.gmra.mxu0 %v226
    %v331 = vpop.f32.mrf.mxu0
    %v332 = vadd.f32 0.0, %v331
    %v333 = vpop.f32.mrf.mxu0
    %v334 = vadd.f32 0.0, %v333
    %335 = vmatmul.bf16.gmra.mxu0 %v227
    %v336 = vpop.f32.mrf.mxu0
    %v337 = vadd.f32 0.0, %v336
    %v338 = vpop.f32.mrf.mxu0
    %v339 = vadd.f32 0.0, %v338
    %340 = vmatmul.bf16.gmra.mxu0 %v228
    %v341 = vpop.f32.mrf.mxu0
    %v342 = vadd.f32 0.0, %v341
    %v343 = vpop.f32.mrf.mxu0
    %v344 = vadd.f32 0.0, %v343
    %345 = vmatmul.bf16.gmra.mxu0 %v229
    %v346 = vpop.f32.mrf.mxu0
    %v347 = vadd.f32 0.0, %v346
    %v348 = vpop.f32.mrf.mxu0
    %v349 = vadd.f32 0.0, %v348
    %350 = vmatmul.bf16.gmra.mxu0 %v230
    %v351 = vpop.f32.mrf.mxu0
    %v352 = vadd.f32 0.0, %v351
    %v353 = vpop.f32.mrf.mxu0
    %v354 = vadd.f32 0.0, %v353
    %355 = vmatmul.bf16.gmra.mxu0 %v231
    %v356 = vpop.f32.mrf.mxu0
    %v357 = vadd.f32 0.0, %v356
    %v358 = vpop.f32.mrf.mxu0
    %v359 = vadd.f32 0.0, %v358
    %360 = vmatmul.bf16.gmra.mxu0 %v232
    %v361 = vpop.f32.mrf.mxu0
    %v362 = vadd.f32 0.0, %v361
    %v363 = vpop.f32.mrf.mxu0
    %v364 = vadd.f32 0.0, %v363
    %365 = vmatmul.bf16.gmra.mxu0 %v233
    %v366 = vpop.f32.mrf.mxu0
    %v367 = vadd.f32 0.0, %v366
    %v368 = vpop.f32.mrf.mxu0
    %v369 = vadd.f32 0.0, %v368
    %370 = vmatmul.bf16.gmra.mxu0 %v234
    %v371 = vpop.f32.mrf.mxu0
    %v372 = vadd.f32 0.0, %v371
    %v373 = vpop.f32.mrf.mxu0
    %v374 = vadd.f32 0.0, %v373
    %375 = vmatmul.bf16.gmra.mxu0 %v235
    %v376 = vpop.f32.mrf.mxu0
    %v377 = vadd.f32 0.0, %v376
    %v378 = vpop.f32.mrf.mxu0
    %v379 = vadd.f32 0.0, %v378
    %380 = vmatmul.bf16.gmra.mxu0 %v236
    %v381 = vpop.f32.mrf.mxu0
    %v382 = vadd.f32 0.0, %v381
    %v383 = vpop.f32.mrf.mxu0
    %v384 = vadd.f32 0.0, %v383
    %385 = vmatmul.bf16.gmra.mxu0 %v237
    %v386 = vpop.f32.mrf.mxu0
    %v387 = vadd.f32 0.0, %v386
    %v388 = vpop.f32.mrf.mxu0
    %v389 = vadd.f32 0.0, %v388
    %390 = vmatmul.bf16.gmra.mxu0 %v238
    %v391 = vpop.f32.mrf.mxu0
    %v392 = vadd.f32 0.0, %v391
    %v393 = vpop.f32.mrf.mxu0
    %v394 = vadd.f32 0.0, %v393
    %395 = vmatmul.bf16.gmra.mxu0 %v239
    %v396 = vpop.f32.mrf.mxu0
    %v397 = vadd.f32 0.0, %v396
    %v398 = vpop.f32.mrf.mxu0
    %v399 = vadd.f32 0.0, %v398
    %400 = vmatmul.bf16.gmra.mxu0 %v240
    %v401 = vpop.f32.mrf.mxu0
    %v402 = vadd.f32 0.0, %v401
    %v403 = vpop.f32.mrf.mxu0
    %v404 = vadd.f32 0.0, %v403
    %405 = vmatmul.bf16.gmra.mxu0 %v241
    %v406 = vpop.f32.mrf.mxu0
    %v407 = vadd.f32 0.0, %v406
    %v408 = vpop.f32.mrf.mxu0
    %v409 = vadd.f32 0.0, %v408
    %410 = vdwg.mxu0
    %v427 = vunpack.c.l.b16 %v242
    %v428 = vunpack.c.l.b16 %v243
    %v429 = vunpack.c.l.b16 %v244
    %v430 = vunpack.c.l.b16 %v245
    %v431 = vunpack.c.l.b16 %v246
    %v432 = vunpack.c.l.b16 %v247
    %v433 = vunpack.c.l.b16 %v248
    %v434 = vunpack.c.l.b16 %v249
    %v435 = vunpack.c.l.b16 %v250
    %v436 = vunpack.c.l.b16 %v251
    %v437 = vunpack.c.l.b16 %v252
    %v438 = vunpack.c.l.b16 %v253
    %v439 = vunpack.c.l.b16 %v254
    %v440 = vunpack.c.l.b16 %v255
    %v441 = vunpack.c.l.b16 %v256
    %v442 = vunpack.c.l.b16 %v257
    %v443 = vpack.c.b16 %v428, %v427
    %v444 = vpack.c.b16 %v430, %v429
    %v445 = vpack.c.b16 %v432, %v431
    %v446 = vpack.c.b16 %v434, %v433
    %v447 = vpack.c.b16 %v436, %v435
    %v448 = vpack.c.b16 %v438, %v437
    %v449 = vpack.c.b16 %v440, %v439
    %v450 = vpack.c.b16 %v442, %v441
    %459 = vmatpush.bf16.msra.mxu0 %v450
    %460 = vmatpush.bf16.msra.mxu0 %v449
    %461 = vmatpush.bf16.msra.mxu0 %v448
    %462 = vmatpush.bf16.msra.mxu0 %v447
    %463 = vmatpush.bf16.msra.mxu0 %v446
    %464 = vmatpush.bf16.msra.mxu0 %v445
    %465 = vmatpush.bf16.msra.mxu0 %v444
    %466 = vmatpush.bf16.msra.mxu0 %v443
    %467 = vmatmul.bf16.gmra.mxu0 %v178
    %v468 = vpop.f32.mrf.mxu0
    %v469 = vadd.f32 %v332, %v468
    %v470 = vpop.f32.mrf.mxu0
    %v471 = vadd.f32 %v334, %v470
    %472 = vmatmul.bf16.gmra.mxu0 %v179
    %v473 = vpop.f32.mrf.mxu0
    %v474 = vadd.f32 %v337, %v473
    %v475 = vpop.f32.mrf.mxu0
    %v476 = vadd.f32 %v339, %v475
    %477 = vmatmul.bf16.gmra.mxu0 %v180
    %v478 = vpop.f32.mrf.mxu0
    %v479 = vadd.f32 %v342, %v478
    %v480 = vpop.f32.mrf.mxu0
    %v481 = vadd.f32 %v344, %v480
    %482 = vmatmul.bf16.gmra.mxu0 %v181
    %v483 = vpop.f32.mrf.mxu0
    %v484 = vadd.f32 %v347, %v483
    %v485 = vpop.f32.mrf.mxu0
    %v486 = vadd.f32 %v349, %v485
    %487 = vmatmul.bf16.gmra.mxu0 %v182
    %v488 = vpop.f32.mrf.mxu0
    %v489 = vadd.f32 %v352, %v488
    %v490 = vpop.f32.mrf.mxu0
    %v491 = vadd.f32 %v354, %v490
    %492 = vmatmul.bf16.gmra.mxu0 %v183
    %v493 = vpop.f32.mrf.mxu0
    %v494 = vadd.f32 %v357, %v493
    %v495 = vpop.f32.mrf.mxu0
    %v496 = vadd.f32 %v359, %v495
    %497 = vmatmul.bf16.gmra.mxu0 %v184
    %v498 = vpop.f32.mrf.mxu0
    %v499 = vadd.f32 %v362, %v498
    %v500 = vpop.f32.mrf.mxu0
    %v501 = vadd.f32 %v364, %v500
    %502 = vmatmul.bf16.gmra.mxu0 %v185
    %v503 = vpop.f32.mrf.mxu0
    %v504 = vadd.f32 %v367, %v503
    %v505 = vpop.f32.mrf.mxu0
    %v506 = vadd.f32 %v369, %v505
    %507 = vmatmul.bf16.gmra.mxu0 %v186
    %v508 = vpop.f32.mrf.mxu0
    %v509 = vadd.f32 %v372, %v508
    %v510 = vpop.f32.mrf.mxu0
    %v511 = vadd.f32 %v374, %v510
    %512 = vmatmul.bf16.gmra.mxu0 %v187
    %v513 = vpop.f32.mrf.mxu0
    %v514 = vadd.f32 %v377, %v513
    %v515 = vpop.f32.mrf.mxu0
    %v516 = vadd.f32 %v379, %v515
    %517 = vmatmul.bf16.gmra.mxu0 %v188
    %v518 = vpop.f32.mrf.mxu0
    %v519 = vadd.f32 %v382, %v518
    %v520 = vpop.f32.mrf.mxu0
    %v521 = vadd.f32 %v384, %v520
    %522 = vmatmul.bf16.gmra.mxu0 %v189
    %v523 = vpop.f32.mrf.mxu0
    %v524 = vadd.f32 %v387, %v523
    %v525 = vpop.f32.mrf.mxu0
    %v526 = vadd.f32 %v389, %v525
    %527 = vmatmul.bf16.gmra.mxu0 %v190
    %v528 = vpop.f32.mrf.mxu0
    %v529 = vadd.f32 %v392, %v528
    %v530 = vpop.f32.mrf.mxu0
    %v531 = vadd.f32 %v394, %v530
    %532 = vmatmul.bf16.gmra.mxu0 %v191
    %v533 = vpop.f32.mrf.mxu0
    %v534 = vadd.f32 %v397, %v533
    %v535 = vpop.f32.mrf.mxu0
    %v536 = vadd.f32 %v399, %v535
    %537 = vmatmul.bf16.gmra.mxu0 %v192
    %v538 = vpop.f32.mrf.mxu0
    %v539 = vadd.f32 %v402, %v538
    %v540 = vpop.f32.mrf.mxu0
    %v541 = vadd.f32 %v404, %v540
    %542 = vmatmul.bf16.gmra.mxu0 %v193
    %v543 = vpop.f32.mrf.mxu0
    %v544 = vadd.f32 %v407, %v543
    %v545 = vpop.f32.mrf.mxu0
    %v546 = vadd.f32 %v409, %v545
    %547 = vdwg.mxu0
    %v548 = vld [vmem:[%s4] sm:$0x1]
    %v550 = vperm.slane %v548, 0
    %v552 = vadd.f32 %v469, %v550
    %v553 = vadd.f32 %v471, %v550
    %v554 = vadd.f32 %v474, %v550
    %v555 = vadd.f32 %v476, %v550
    %v556 = vadd.f32 %v479, %v550
    %v557 = vadd.f32 %v481, %v550
    %v558 = vadd.f32 %v484, %v550
    %v559 = vadd.f32 %v486, %v550
    %v560 = vadd.f32 %v489, %v550
    %v561 = vadd.f32 %v491, %v550
    %v562 = vadd.f32 %v494, %v550
    %v563 = vadd.f32 %v496, %v550
    %v564 = vadd.f32 %v499, %v550
    %v565 = vadd.f32 %v501, %v550
    %v566 = vadd.f32 %v504, %v550
    %v567 = vadd.f32 %v506, %v550
    %v568 = vadd.f32 %v509, %v550
    %v569 = vadd.f32 %v511, %v550
    %v570 = vadd.f32 %v514, %v550
    %v571 = vadd.f32 %v516, %v550
    %v572 = vadd.f32 %v519, %v550
    %v573 = vadd.f32 %v521, %v550
    %v574 = vadd.f32 %v524, %v550
    %v575 = vadd.f32 %v526, %v550
    %v576 = vadd.f32 %v529, %v550
    %v577 = vadd.f32 %v531, %v550
    %v578 = vadd.f32 %v534, %v550
    %v579 = vadd.f32 %v536, %v550
    %v580 = vadd.f32 %v539, %v550
    %v581 = vadd.f32 %v541, %v550
    %v582 = vadd.f32 %v544, %v550
    %v583 = vadd.f32 %v546, %v550
    %v584 = vmax.f32 %v552, 0.0
    %v585 = vmax.f32 %v553, 0.0
    %v586 = vmax.f32 %v554, 0.0
    %v587 = vmax.f32 %v555, 0.0
    %v588 = vmax.f32 %v556, 0.0
    %v589 = vmax.f32 %v557, 0.0
    %v590 = vmax.f32 %v558, 0.0
    %v591 = vmax.f32 %v559, 0.0
    %v592 = vmax.f32 %v560, 0.0
    %v593 = vmax.f32 %v561, 0.0
    %v594 = vmax.f32 %v562, 0.0
    %v595 = vmax.f32 %v563, 0.0
    %v596 = vmax.f32 %v564, 0.0
    %v597 = vmax.f32 %v565, 0.0
    %v598 = vmax.f32 %v566, 0.0
    %v599 = vmax.f32 %v567, 0.0
    %v600 = vmax.f32 %v568, 0.0
    %v601 = vmax.f32 %v569, 0.0
    %v602 = vmax.f32 %v570, 0.0
    %v603 = vmax.f32 %v571, 0.0
    %v604 = vmax.f32 %v572, 0.0
    %v605 = vmax.f32 %v573, 0.0
    %v606 = vmax.f32 %v574, 0.0
    %v607 = vmax.f32 %v575, 0.0
    %v608 = vmax.f32 %v576, 0.0
    %v609 = vmax.f32 %v577, 0.0
    %v610 = vmax.f32 %v578, 0.0
    %v611 = vmax.f32 %v579, 0.0
    %v612 = vmax.f32 %v580, 0.0
    %v613 = vmax.f32 %v581, 0.0
    %v614 = vmax.f32 %v582, 0.0
    %v615 = vmax.f32 %v583, 0.0
    %v616 = vld [vmem:[%s5] sm:$0x1]
    %v618 = vperm.slane %v616, 0
    %v620 = vmul.f32 %v584, %v618
    %v621 = vmul.f32 %v585, %v618
    %v622 = vmul.f32 %v586, %v618
    %v623 = vmul.f32 %v587, %v618
    %v624 = vmul.f32 %v588, %v618
    %v625 = vmul.f32 %v589, %v618
    %v626 = vmul.f32 %v590, %v618
    %v627 = vmul.f32 %v591, %v618
    %v628 = vmul.f32 %v592, %v618
    %v629 = vmul.f32 %v593, %v618
    %v630 = vmul.f32 %v594, %v618
    %v631 = vmul.f32 %v595, %v618
    %v632 = vmul.f32 %v596, %v618
    %v633 = vmul.f32 %v597, %v618
    %v634 = vmul.f32 %v598, %v618
    %v635 = vmul.f32 %v599, %v618
    %v636 = vmul.f32 %v600, %v618
    %v637 = vmul.f32 %v601, %v618
    %v638 = vmul.f32 %v602, %v618
    %v639 = vmul.f32 %v603, %v618
    %v640 = vmul.f32 %v604, %v618
    %v641 = vmul.f32 %v605, %v618
    %v642 = vmul.f32 %v606, %v618
    %v643 = vmul.f32 %v607, %v618
    %v644 = vmul.f32 %v608, %v618
    %v645 = vmul.f32 %v609, %v618
    %v646 = vmul.f32 %v610, %v618
    %v647 = vmul.f32 %v611, %v618
    %v648 = vmul.f32 %v612, %v618
    %v649 = vmul.f32 %v613, %v618
    %v650 = vmul.f32 %v614, %v618
    %v651 = vmul.f32 %v615, %v618
    %652 = vadd.xlane.f32.xlu0 %v620
    %v653 = vpop.xlane.xlu0 %652
    %654 = vadd.xlane.f32.xlu0 %v621
    %v655 = vpop.xlane.xlu0 %654
    %656 = vadd.xlane.f32.xlu0 %v622
    %v657 = vpop.xlane.xlu0 %656
    %658 = vadd.xlane.f32.xlu0 %v623
    %v659 = vpop.xlane.xlu0 %658
    %660 = vadd.xlane.f32.xlu0 %v624
    %v661 = vpop.xlane.xlu0 %660
    %662 = vadd.xlane.f32.xlu0 %v625
    %v663 = vpop.xlane.xlu0 %662
    %664 = vadd.xlane.f32.xlu0 %v626
    %v665 = vpop.xlane.xlu0 %664
    %666 = vadd.xlane.f32.xlu0 %v627
    %v667 = vpop.xlane.xlu0 %666
    %668 = vadd.xlane.f32.xlu0 %v628
    %v669 = vpop.xlane.xlu0 %668
    %670 = vadd.xlane.f32.xlu0 %v629
    %v671 = vpop.xlane.xlu0 %670
    %672 = vadd.xlane.f32.xlu0 %v630
    %v673 = vpop.xlane.xlu0 %672
    %674 = vadd.xlane.f32.xlu0 %v631
    %v675 = vpop.xlane.xlu0 %674
    %676 = vadd.xlane.f32.xlu0 %v632
    %v677 = vpop.xlane.xlu0 %676
    %678 = vadd.xlane.f32.xlu0 %v633
    %v679 = vpop.xlane.xlu0 %678
    %680 = vadd.xlane.f32.xlu0 %v634
    %v681 = vpop.xlane.xlu0 %680
    %682 = vadd.xlane.f32.xlu0 %v635
    %v683 = vpop.xlane.xlu0 %682
    %684 = vadd.xlane.f32.xlu0 %v636
    %v685 = vpop.xlane.xlu0 %684
    %686 = vadd.xlane.f32.xlu0 %v637
    %v687 = vpop.xlane.xlu0 %686
    %688 = vadd.xlane.f32.xlu0 %v638
    %v689 = vpop.xlane.xlu0 %688
    %690 = vadd.xlane.f32.xlu0 %v639
    %v691 = vpop.xlane.xlu0 %690
    %692 = vadd.xlane.f32.xlu0 %v640
    %v693 = vpop.xlane.xlu0 %692
    %694 = vadd.xlane.f32.xlu0 %v641
    %v695 = vpop.xlane.xlu0 %694
    %696 = vadd.xlane.f32.xlu0 %v642
    %v697 = vpop.xlane.xlu0 %696
    %698 = vadd.xlane.f32.xlu0 %v643
    %v699 = vpop.xlane.xlu0 %698
    %700 = vadd.xlane.f32.xlu0 %v644
    %v701 = vpop.xlane.xlu0 %700
    %702 = vadd.xlane.f32.xlu0 %v645
    %v703 = vpop.xlane.xlu0 %702
    %704 = vadd.xlane.f32.xlu0 %v646
    %v705 = vpop.xlane.xlu0 %704
    %706 = vadd.xlane.f32.xlu0 %v647
    %v707 = vpop.xlane.xlu0 %706
    %708 = vadd.xlane.f32.xlu0 %v648
    %v709 = vpop.xlane.xlu0 %708
    %710 = vadd.xlane.f32.xlu0 %v649
    %v711 = vpop.xlane.xlu0 %710
    %712 = vadd.xlane.f32.xlu0 %v650
    %v713 = vpop.xlane.xlu0 %712
    %714 = vadd.xlane.f32.xlu0 %v651
    %v715 = vpop.xlane.xlu0 %714
    %s716 = sld [smem:[#allocation2]]
    %v717 = vstv %s716
    %v718 = vadd.f32 %v653, %v717
    %v719 = vadd.f32 %v655, %v717
    %v720 = vadd.f32 %v657, %v717
    %v721 = vadd.f32 %v659, %v717
    %v722 = vadd.f32 %v661, %v717
    %v723 = vadd.f32 %v663, %v717
    %v724 = vadd.f32 %v665, %v717
    %v725 = vadd.f32 %v667, %v717
    %v726 = vadd.f32 %v669, %v717
    %v727 = vadd.f32 %v671, %v717
    %v728 = vadd.f32 %v673, %v717
    %v729 = vadd.f32 %v675, %v717
    %v730 = vadd.f32 %v677, %v717
    %v731 = vadd.f32 %v679, %v717
    %v732 = vadd.f32 %v681, %v717
    %v733 = vadd.f32 %v683, %v717
    %v734 = vadd.f32 %v685, %v717
    %v735 = vadd.f32 %v687, %v717
    %v736 = vadd.f32 %v689, %v717
    %v737 = vadd.f32 %v691, %v717
    %v738 = vadd.f32 %v693, %v717
    %v739 = vadd.f32 %v695, %v717
    %v740 = vadd.f32 %v697, %v717
    %v741 = vadd.f32 %v699, %v717
    %v742 = vadd.f32 %v701, %v717
    %v743 = vadd.f32 %v703, %v717
    %v744 = vadd.f32 %v705, %v717
    %v745 = vadd.f32 %v707, %v717
    %v746 = vadd.f32 %v709, %v717
    %v747 = vadd.f32 %v711, %v717
    %v748 = vadd.f32 %v713, %v717
    %v749 = vadd.f32 %v715, %v717
    %v750 = vld [vmem:[%s106] sm:$0xff]
    %v751 = vld [vmem:[%s106 + $0x8] sm:$0xff]
    %v752 = vld [vmem:[%s106 + $0x10] sm:$0xff]
    %v753 = vld [vmem:[%s106 + $0x18] sm:$0xff]
    %v754 = vld [vmem:[%s106 + $0x20] sm:$0xff]
    %v755 = vld [vmem:[%s106 + $0x28] sm:$0xff]
    %v756 = vld [vmem:[%s106 + $0x30] sm:$0xff]
    %v757 = vld [vmem:[%s106 + $0x38] sm:$0xff]
    %v758 = vld [vmem:[%s106 + $0x40] sm:$0xff]
    %v759 = vld [vmem:[%s106 + $0x48] sm:$0xff]
    %v760 = vld [vmem:[%s106 + $0x50] sm:$0xff]
    %v761 = vld [vmem:[%s106 + $0x58] sm:$0xff]
    %v762 = vld [vmem:[%s106 + $0x60] sm:$0xff]
    %v763 = vld [vmem:[%s106 + $0x68] sm:$0xff]
    %v764 = vld [vmem:[%s106 + $0x70] sm:$0xff]
    %v765 = vld [vmem:[%s106 + $0x78] sm:$0xff]
    %v766 = vld [vmem:[%s106 + $0x80] sm:$0xff]
    %v767 = vld [vmem:[%s106 + $0x88] sm:$0xff]
    %v768 = vld [vmem:[%s106 + $0x90] sm:$0xff]
    %v769 = vld [vmem:[%s106 + $0x98] sm:$0xff]
    %v770 = vld [vmem:[%s106 + $0xa0] sm:$0xff]
    %v771 = vld [vmem:[%s106 + $0xa8] sm:$0xff]
    %v772 = vld [vmem:[%s106 + $0xb0] sm:$0xff]
    %v773 = vld [vmem:[%s106 + $0xb8] sm:$0xff]
    %v774 = vld [vmem:[%s106 + $0xc0] sm:$0xff]
    %v775 = vld [vmem:[%s106 + $0xc8] sm:$0xff]
    %v776 = vld [vmem:[%s106 + $0xd0] sm:$0xff]
    %v777 = vld [vmem:[%s106 + $0xd8] sm:$0xff]
    %v778 = vld [vmem:[%s106 + $0xe0] sm:$0xff]
    %v779 = vld [vmem:[%s106 + $0xe8] sm:$0xff]
    %v780 = vld [vmem:[%s106 + $0xf0] sm:$0xff]
    %v781 = vld [vmem:[%s106 + $0xf8] sm:$0xff]
    %v782 = vsub.f32 %v718, %v750
    %v783 = vsub.f32 %v719, %v751
    %v784 = vsub.f32 %v720, %v752
    %v785 = vsub.f32 %v721, %v753
    %v786 = vsub.f32 %v722, %v754
    %v787 = vsub.f32 %v723, %v755
    %v788 = vsub.f32 %v724, %v756
    %v789 = vsub.f32 %v725, %v757
    %v790 = vsub.f32 %v726, %v758
    %v791 = vsub.f32 %v727, %v759
    %v792 = vsub.f32 %v728, %v760
    %v793 = vsub.f32 %v729, %v761
    %v794 = vsub.f32 %v730, %v762
    %v795 = vsub.f32 %v731, %v763
    %v796 = vsub.f32 %v732, %v764
    %v797 = vsub.f32 %v733, %v765
    %v798 = vsub.f32 %v734, %v766
    %v799 = vsub.f32 %v735, %v767
    %v800 = vsub.f32 %v736, %v768
    %v801 = vsub.f32 %v737, %v769
    %v802 = vsub.f32 %v738, %v770
    %v803 = vsub.f32 %v739, %v771
    %v804 = vsub.f32 %v740, %v772
    %v805 = vsub.f32 %v741, %v773
    %v806 = vsub.f32 %v742, %v774
    %v807 = vsub.f32 %v743, %v775
    %v808 = vsub.f32 %v744, %v776
    %v809 = vsub.f32 %v745, %v777
    %v810 = vsub.f32 %v746, %v778
    %v811 = vsub.f32 %v747, %v779
    %v812 = vsub.f32 %v748, %v780
    %v813 = vsub.f32 %v749, %v781
    %v814 = vld [vmem:[%s7] sm:$0xff]
    %v815 = vld [vmem:[%s7 + $0x8] sm:$0xff]
    %v816 = vld [vmem:[%s7 + $0x10] sm:$0xff]
    %v817 = vld [vmem:[%s7 + $0x18] sm:$0xff]
    %v818 = vld [vmem:[%s7 + $0x20] sm:$0xff]
    %v819 = vld [vmem:[%s7 + $0x28] sm:$0xff]
    %v820 = vld [vmem:[%s7 + $0x30] sm:$0xff]
    %v821 = vld [vmem:[%s7 + $0x38] sm:$0xff]
    %v822 = vld [vmem:[%s7 + $0x40] sm:$0xff]
    %v823 = vld [vmem:[%s7 + $0x48] sm:$0xff]
    %v824 = vld [vmem:[%s7 + $0x50] sm:$0xff]
    %v825 = vld [vmem:[%s7 + $0x58] sm:$0xff]
    %v826 = vld [vmem:[%s7 + $0x60] sm:$0xff]
    %v827 = vld [vmem:[%s7 + $0x68] sm:$0xff]
    %v828 = vld [vmem:[%s7 + $0x70] sm:$0xff]
    %v829 = vld [vmem:[%s7 + $0x78] sm:$0xff]
    %v830 = vld [vmem:[%s7 + $0x80] sm:$0xff]
    %v831 = vld [vmem:[%s7 + $0x88] sm:$0xff]
    %v832 = vld [vmem:[%s7 + $0x90] sm:$0xff]
    %v833 = vld [vmem:[%s7 + $0x98] sm:$0xff]
    %v834 = vld [vmem:[%s7 + $0xa0] sm:$0xff]
    %v835 = vld [vmem:[%s7 + $0xa8] sm:$0xff]
    %v836 = vld [vmem:[%s7 + $0xb0] sm:$0xff]
    %v837 = vld [vmem:[%s7 + $0xb8] sm:$0xff]
    %v838 = vld [vmem:[%s7 + $0xc0] sm:$0xff]
    %v839 = vld [vmem:[%s7 + $0xc8] sm:$0xff]
    %v840 = vld [vmem:[%s7 + $0xd0] sm:$0xff]
    %v841 = vld [vmem:[%s7 + $0xd8] sm:$0xff]
    %v842 = vld [vmem:[%s7 + $0xe0] sm:$0xff]
    %v843 = vld [vmem:[%s7 + $0xe8] sm:$0xff]
    %v844 = vld [vmem:[%s7 + $0xf0] sm:$0xff]
    %v845 = vld [vmem:[%s7 + $0xf8] sm:$0xff]
    %v846 = vmul.f32 %v782, %v782
    %v847 = vmul.f32 %v783, %v783
    %v848 = vmul.f32 %v784, %v784
    %v849 = vmul.f32 %v785, %v785
    %v850 = vmul.f32 %v786, %v786
    %v851 = vmul.f32 %v787, %v787
    %v852 = vmul.f32 %v788, %v788
    %v853 = vmul.f32 %v789, %v789
    %v854 = vmul.f32 %v790, %v790
    %v855 = vmul.f32 %v791, %v791
    %v856 = vmul.f32 %v792, %v792
    %v857 = vmul.f32 %v793, %v793
    %v858 = vmul.f32 %v794, %v794
    %v859 = vmul.f32 %v795, %v795
    %v860 = vmul.f32 %v796, %v796
    %v861 = vmul.f32 %v797, %v797
    %v862 = vmul.f32 %v798, %v798
    %v863 = vmul.f32 %v799, %v799
    %v864 = vmul.f32 %v800, %v800
    %v865 = vmul.f32 %v801, %v801
    %v866 = vmul.f32 %v802, %v802
    %v867 = vmul.f32 %v803, %v803
    %v868 = vmul.f32 %v804, %v804
    %v869 = vmul.f32 %v805, %v805
    %v870 = vmul.f32 %v806, %v806
    %v871 = vmul.f32 %v807, %v807
    %v872 = vmul.f32 %v808, %v808
    %v873 = vmul.f32 %v809, %v809
    %v874 = vmul.f32 %v810, %v810
    %v875 = vmul.f32 %v811, %v811
    %v876 = vmul.f32 %v812, %v812
    %v877 = vmul.f32 %v813, %v813
    %v878 = vadd.f32 %v814, %v846
    %v879 = vadd.f32 %v815, %v847
    %v880 = vadd.f32 %v816, %v848
    %v881 = vadd.f32 %v817, %v849
    %v882 = vadd.f32 %v818, %v850
    %v883 = vadd.f32 %v819, %v851
    %v884 = vadd.f32 %v820, %v852
    %v885 = vadd.f32 %v821, %v853
    %v886 = vadd.f32 %v822, %v854
    %v887 = vadd.f32 %v823, %v855
    %v888 = vadd.f32 %v824, %v856
    %v889 = vadd.f32 %v825, %v857
    %v890 = vadd.f32 %v826, %v858
    %v891 = vadd.f32 %v827, %v859
    %v892 = vadd.f32 %v828, %v860
    %v893 = vadd.f32 %v829, %v861
    %v894 = vadd.f32 %v830, %v862
    %v895 = vadd.f32 %v831, %v863
    %v896 = vadd.f32 %v832, %v864
    %v897 = vadd.f32 %v833, %v865
    %v898 = vadd.f32 %v834, %v866
    %v899 = vadd.f32 %v835, %v867
    %v900 = vadd.f32 %v836, %v868
    %v901 = vadd.f32 %v837, %v869
    %v902 = vadd.f32 %v838, %v870
    %v903 = vadd.f32 %v839, %v871
    %v904 = vadd.f32 %v840, %v872
    %v905 = vadd.f32 %v841, %v873
    %v906 = vadd.f32 %v842, %v874
    %v907 = vadd.f32 %v843, %v875
    %v908 = vadd.f32 %v844, %v876
    %v909 = vadd.f32 %v845, %v877
    %vm910 = vcmask 7168
    %911 = vst.msk [vmem:[%s7] sm:$0xff] %vm910, %v878
    %912 = vst.msk [vmem:[%s7 + $0x8] sm:$0xff] %vm910, %v879
    %913 = vst.msk [vmem:[%s7 + $0x10] sm:$0xff] %vm910, %v880
    %914 = vst.msk [vmem:[%s7 + $0x18] sm:$0xff] %vm910, %v881
    %915 = vst.msk [vmem:[%s7 + $0x20] sm:$0xff] %vm910, %v882
    %916 = vst.msk [vmem:[%s7 + $0x28] sm:$0xff] %vm910, %v883
    %917 = vst.msk [vmem:[%s7 + $0x30] sm:$0xff] %vm910, %v884
    %918 = vst.msk [vmem:[%s7 + $0x38] sm:$0xff] %vm910, %v885
    %919 = vst.msk [vmem:[%s7 + $0x40] sm:$0xff] %vm910, %v886
    %920 = vst.msk [vmem:[%s7 + $0x48] sm:$0xff] %vm910, %v887
    %921 = vst.msk [vmem:[%s7 + $0x50] sm:$0xff] %vm910, %v888
    %922 = vst.msk [vmem:[%s7 + $0x58] sm:$0xff] %vm910, %v889
    %923 = vst.msk [vmem:[%s7 + $0x60] sm:$0xff] %vm910, %v890
    %924 = vst.msk [vmem:[%s7 + $0x68] sm:$0xff] %vm910, %v891
    %925 = vst.msk [vmem:[%s7 + $0x70] sm:$0xff] %vm910, %v892
    %926 = vst.msk [vmem:[%s7 + $0x78] sm:$0xff] %vm910, %v893
    %927 = vst.msk [vmem:[%s7 + $0x80] sm:$0xff] %vm910, %v894
    %928 = vst.msk [vmem:[%s7 + $0x88] sm:$0xff] %vm910, %v895
    %929 = vst.msk [vmem:[%s7 + $0x90] sm:$0xff] %vm910, %v896
    %930 = vst.msk [vmem:[%s7 + $0x98] sm:$0xff] %vm910, %v897
    %931 = vst.msk [vmem:[%s7 + $0xa0] sm:$0xff] %vm910, %v898
    %932 = vst.msk [vmem:[%s7 + $0xa8] sm:$0xff] %vm910, %v899
    %933 = vst.msk [vmem:[%s7 + $0xb0] sm:$0xff] %vm910, %v900
    %934 = vst.msk [vmem:[%s7 + $0xb8] sm:$0xff] %vm910, %v901
    %935 = vst.msk [vmem:[%s7 + $0xc0] sm:$0xff] %vm910, %v902
    %936 = vst.msk [vmem:[%s7 + $0xc8] sm:$0xff] %vm910, %v903
    %937 = vst.msk [vmem:[%s7 + $0xd0] sm:$0xff] %vm910, %v904
    %938 = vst.msk [vmem:[%s7 + $0xd8] sm:$0xff] %vm910, %v905
    %939 = vst.msk [vmem:[%s7 + $0xe0] sm:$0xff] %vm910, %v906
    %940 = vst.msk [vmem:[%s7 + $0xe8] sm:$0xff] %vm910, %v907
    %941 = vst.msk [vmem:[%s7 + $0xf0] sm:$0xff] %vm910, %v908
    %942 = vst.msk [vmem:[%s7 + $0xf8] sm:$0xff] %vm910, %v909
    // Predicated region
    $region42: #{tpu_custom_call.1} parent=1 // pred_check
      _
    $region43: #{tpu_custom_call.1} parent=1 // pred_check_branch
      %944 = sbr.rel (0) target = $region45
    $region44: #{tpu_custom_call.1} parent=1 // pred_region
      _
    $region45: #{tpu_custom_call.1} parent=1 // pred_fallthru
      _
    // Predicated region
    $region46: #{tpu_custom_call.1} parent=1 // pred_check
      _
    $region47: #{tpu_custom_call.1} parent=1 // pred_check_branch
      %946 = sbr.rel (0) target = $region49
    $region48: #{tpu_custom_call.1} parent=1 // pred_region
      _
    $region49: #{tpu_custom_call.1} parent=1 // pred_fallthru
      _
    %947 = vsyncpa [#allocation4], 1
    %948 = vsyncpa [#allocation6], 1

</llo_original>
